<compile_context>
chip_gen: v6e
topology: v6e:2x2x1
jax: 0.10.0
libtpu: 0.0.40
codegen_flags: <defaults>
</compile_context>

<pallas_src>
import jax
import jax.numpy as jnp
from jax import lax
from jax.experimental import pallas as pl
from jax.experimental.pallas import tpu as pltpu


_DMA_RING = 8  # in-flight row gathers per table on the HBM path


def _round_up(a, m):
    return ((a + m - 1) // m) * m


def _make_vmem_gather_kernel(tile_b, K):
    """Tables resident in VMEM; rows gathered with dynamic in-VMEM loads."""

    def kernel(uidx_ref, iidx_ref, w_ref, h_ref, emb_ref, out_ref):
        # uidx_ref / iidx_ref : (B_pad,) int32 scalar-prefetch refs (SMEM)
        # w_ref / h_ref       : full embedding tables, resident in VMEM
        # emb_ref             : (tile_b, 2K) output tile (VMEM)
        # out_ref             : (tile_b, 1) f32 score tile (VMEM)
        base = pl.program_id(0) * tile_b

        def gather_row(r, carry):
            u = uidx_ref[base + r]
            v = iidx_ref[base + r]
            # Write each gathered row straight into the output tile
            # (no scratch buffers, no concat).
            emb_ref[pl.ds(r, 1), 0:K] = w_ref[pl.ds(u, 1), :].astype(emb_ref.dtype)
            emb_ref[pl.ds(r, 1), K:2 * K] = h_ref[pl.ds(v, 1), :].astype(emb_ref.dtype)
            return carry

        lax.fori_loop(0, tile_b, gather_row, 0)

        # Score rides otherwise-idle VPU/XLU slots; kernel is gather-bound.
        u_rows = emb_ref[:, 0:K].astype(jnp.float32)
        v_rows = emb_ref[:, K:2 * K].astype(jnp.float32)
        out_ref[...] = jnp.sum(u_rows * v_rows, axis=1, keepdims=True)

    return kernel


def _make_hbm_gather_kernel(tile_b, K, ring):
    """Tables stay in HBM; rows gathered with per-row DMAs + a semaphore ring."""

    def kernel(uidx_ref, iidx_ref, w_hbm, h_hbm, emb_ref, out_ref,
               ubuf, vbuf, usem, vsem):
        base = pl.program_id(0) * tile_b

        def issue(r, carry):
            slot = r % ring

            # Before reusing a semaphore slot, retire the DMA issued `ring`
            # rows earlier (reconstructed descriptor: only shape + sem matter).
            @pl.when(r >= ring)
            def _():
                pltpu.make_async_copy(
                    w_hbm.at[pl.ds(0, 1), :], ubuf.at[pl.ds(0, 1), :],
                    usem.at[slot]).wait()
                pltpu.make_async_copy(
                    h_hbm.at[pl.ds(0, 1), :], vbuf.at[pl.ds(0, 1), :],
                    vsem.at[slot]).wait()

            u = uidx_ref[base + r]
            v = iidx_ref[base + r]
            pltpu.make_async_copy(
                w_hbm.at[pl.ds(u, 1), :], ubuf.at[pl.ds(r, 1), :],
                usem.at[slot]).start()
            pltpu.make_async_copy(
                h_hbm.at[pl.ds(v, 1), :], vbuf.at[pl.ds(r, 1), :],
                vsem.at[slot]).start()
            return carry

        lax.fori_loop(0, tile_b, issue, 0)

        # Drain the (at most `ring`) still-outstanding copies per table.
        for s in range(min(ring, tile_b)):
            pltpu.make_async_copy(
                w_hbm.at[pl.ds(0, 1), :], ubuf.at[pl.ds(0, 1), :], usem.at[s]).wait()
            pltpu.make_async_copy(
                h_hbm.at[pl.ds(0, 1), :], vbuf.at[pl.ds(0, 1), :], vsem.at[s]).wait()

        emb_ref[...] = jnp.concatenate([ubuf[...], vbuf[...]], axis=1).astype(emb_ref.dtype)
        out_ref[...] = jnp.sum(ubuf[...].astype(jnp.float32) * vbuf[...].astype(jnp.float32),
                               axis=1, keepdims=True)

    return kernel


def mf_forward(x, W, H, *, tile_b=256, force_hbm_gather=False,
               vmem_table_budget_bytes=24 * 1024 * 1024):
    """x: (B, 2) int; W: (num_users, K); H: (num_items, K).
    Returns (out (B,), emb (B, 2K)) matching MF.forward(x, is_training=False)."""
    B = x.shape[0]
    num_users, K = W.shape
    num_items, K_h = H.shape
    assert K_h == K

    # Clamp indices: an OOB row gather would otherwise hard-fault the chip.
    # TODO(synk): torch.nn.Embedding raises on OOB indices; here we clamp.
    uidx = jnp.clip(x[:, 0].astype(jnp.int32), 0, num_users - 1)
    iidx = jnp.clip(x[:, 1].astype(jnp.int32), 0, num_items - 1)

    # Batch tile: large enough to amortize per-step overhead, never larger
    # than the padded batch, always a multiple of 8.
    tile_b = _round_up(max(8, min(tile_b, _round_up(B, 8))), 8)
    B_pad = _round_up(B, tile_b)
    if B_pad != B:
        uidx = jnp.pad(uidx, (0, B_pad - B))   # index 0 is always valid
        iidx = jnp.pad(iidx, (0, B_pad - B))
    num_tiles = B_pad // tile_b

    emb_dtype = W.dtype
    table_bytes = (num_users + num_items) * K * W.dtype.itemsize
    use_vmem_tables = (not force_hbm_gather) and (2 * table_bytes <= vmem_table_budget_bytes)

    out_shape = (jax.ShapeDtypeStruct((B_pad, 2 * K), emb_dtype),
                 jax.ShapeDtypeStruct((B_pad, 1), jnp.float32))
    out_specs = (pl.BlockSpec((tile_b, 2 * K), lambda i, u, v: (i, 0)),
                 pl.BlockSpec((tile_b, 1), lambda i, u, v: (i, 0)))

    if use_vmem_tables:
        kernel = _make_vmem_gather_kernel(tile_b, K)
        in_specs = [
            # Whole table as a single block, constant index_map -> fetched once.
            pl.BlockSpec((num_users, K), lambda i, u, v: (0, 0)),
            pl.BlockSpec((num_items, K), lambda i, u, v: (0, 0)),
        ]
        scratch_shapes = []
    else:
        kernel = _make_hbm_gather_kernel(tile_b, K, _DMA_RING)
        in_specs = [
            pl.BlockSpec(memory_space=pl.ANY),   # W stays in HBM
            pl.BlockSpec(memory_space=pl.ANY),   # H stays in HBM
        ]
        scratch_shapes = [
            pltpu.VMEM((tile_b, K), W.dtype),
            pltpu.VMEM((tile_b, K), H.dtype),
            pltpu.SemaphoreType.DMA((_DMA_RING,)),
            pltpu.SemaphoreType.DMA((_DMA_RING,)),
        ]

    emb_pad, out_pad = pl.pallas_call(
        kernel,
        out_shape=out_shape,
        grid_spec=pltpu.PrefetchScalarGridSpec(
            num_scalar_prefetch=2,
            grid=(num_tiles,),
            in_specs=in_specs,
            out_specs=out_specs,
            scratch_shapes=scratch_shapes,
        ),
        compiler_params=pltpu.CompilerParams(
            dimension_semantics=("parallel",),       # lets v7x split tiles over 2 TCs
            vmem_limit_bytes=32 * 1024 * 1024,       # valid on v5e/v6e/v7x
        ),
    )(uidx, iidx, W, H)

    return out_pad[:B, 0], emb_pad[:B]


if __name__ == "__main__":
    num_users = 16
    num_items = 32
    embedding_k = 4
    batch = 8

    key = jax.random.PRNGKey(0)
    k_w, k_h, k_u, k_i = jax.random.split(key, 4)

    # Deterministic "parameters" (torch.nn.Embedding default init ~ N(0,1)).
    W = jax.random.normal(k_w, (num_users, embedding_k), dtype=jnp.float32)
    H = jax.random.normal(k_h, (num_items, embedding_k), dtype=jnp.float32)

    user_idx = jax.random.randint(k_u, (batch,), 0, num_users, dtype=jnp.int32)
    item_idx = jax.random.randint(k_i, (batch,), 0, num_items, dtype=jnp.int32)
    x = jnp.stack([user_idx, item_idx], axis=1)   # (B, 2) int32

    # Pure-JAX reference.
    U_exp = W[user_idx]
    V_exp = H[item_idx]
    out_expected = jnp.sum(U_exp * V_exp, axis=1)
    emb_expected = jnp.concatenate([U_exp, V_exp], axis=1)

    # Path 1: tables resident in VMEM (default for small tables).
    out1, emb1 = mf_forward(x, W, H)
    out1 = jax.block_until_ready(out1)
    emb1 = jax.block_until_ready(emb1)
    assert out1.shape == (batch,) and emb1.shape == (batch, 2 * embedding_k)
    assert jnp.allclose(emb1, emb_expected, atol=1e-6), "embedding mismatch (VMEM path)"
    assert jnp.allclose(out1, out_expected, atol=1e-5), "score mismatch (VMEM path)"

    # Path 2: large-table fallback (HBM-resident tables, DMA row gather).
    out2, emb2 = mf_forward(x, W, H, force_hbm_gather=True)
    out2 = jax.block_until_ready(out2)
    emb2 = jax.block_until_ready(emb2)
    assert jnp.allclose(emb2, emb_expected, atol=1e-6), "embedding mismatch (HBM path)"
    assert jnp.allclose(out2, out_expected, atol=1e-5), "score mismatch (HBM path)"

    print("KERNEL_OK")
</pallas_src>

<mosaic_0001>
module attributes {stable_mosaic.version = 11 : i64} {
  func.func @kernel(%arg0: i32, %arg1: memref<8xi32, #tpu.memory_space<smem>>, %arg2: memref<8xi32, #tpu.memory_space<smem>>, %arg3: memref<16x4xf32, #tpu.memory_space<vmem>>, %arg4: memref<32x4xf32, #tpu.memory_space<vmem>>, %arg5: memref<8x8xf32, #tpu.memory_space<vmem>>, %arg6: memref<8x1xf32, #tpu.memory_space<vmem>>) attributes {dimension_semantics = [#tpu.dimension_semantics<parallel>], iteration_bounds = array<i64: 1>, scalar_prefetch = 2 : i64, scratch_operands = 0 : i64, tpu.core_type = #tpu.core_type<tc>, window_params = [{pipeline_mode = #tpu.pipeline_mode<synchronous>, transform_indices = @transform_0, window_bounds = array<i64: 16, 4>}, {pipeline_mode = #tpu.pipeline_mode<synchronous>, transform_indices = @transform_1, window_bounds = array<i64: 32, 4>}, {transform_indices = @transform_2, window_bounds = array<i64: 8, 8>}, {transform_indices = @transform_3, window_bounds = array<i64: 8, 1>}]} {
    %c8_i32 = arith.constant 8 : i32
    %0 = arith.muli %arg0, %c8_i32 : i32
    %c0_i32 = arith.constant 0 : i32
    %c8_i32_0 = arith.constant 8 : i32
    %1 = arith.addi %c0_i32, %c8_i32_0 : i32
    %c1_i32 = arith.constant 1 : i32
    scf.for %arg7 = %c0_i32 to %1 step %c1_i32  : i32 {
      %8 = arith.addi %0, %arg7 : i32
      %9 = arith.index_cast %8 : i32 to index
      %10 = memref.load %arg1[%9] : memref<8xi32, #tpu.memory_space<smem>>
      %11 = arith.addi %0, %arg7 : i32
      %12 = arith.index_cast %11 : i32 to index
      %13 = memref.load %arg2[%12] : memref<8xi32, #tpu.memory_space<smem>>
      %14 = arith.index_cast %10 : i32 to index
      %c0_6 = arith.constant 0 : index
      %15 = vector.load %arg3[%14, %c0_6] : memref<16x4xf32, #tpu.memory_space<vmem>>, vector<1x4xf32>
      %16 = arith.index_cast %arg7 : i32 to index
      %c0_7 = arith.constant 0 : index
      %17 = vector.load %arg5[%16, %c0_7] : memref<8x8xf32, #tpu.memory_space<vmem>>, vector<1x4xf32>
      tpu.vector_store %arg5[%16, %c0_7], %15 {strides = array<i32>} : memref<8x8xf32, #tpu.memory_space<vmem>>, vector<1x4xf32>,
      %18 = arith.index_cast %13 : i32 to index
      %c0_8 = arith.constant 0 : index
      %19 = vector.load %arg4[%18, %c0_8] : memref<32x4xf32, #tpu.memory_space<vmem>>, vector<1x4xf32>
      %20 = arith.index_cast %arg7 : i32 to index
      %c4_9 = arith.constant 4 : index
      %21 = vector.load %arg5[%20, %c4_9] : memref<8x8xf32, #tpu.memory_space<vmem>>, vector<1x4xf32>
      tpu.vector_store %arg5[%20, %c4_9], %19 {strides = array<i32>} : memref<8x8xf32, #tpu.memory_space<vmem>>, vector<1x4xf32>,
    }
    %c8_i32_1 = arith.constant 8 : i32
    %c0 = arith.constant 0 : index
    %c0_2 = arith.constant 0 : index
    %2 = vector.load %arg5[%c0, %c0_2] : memref<8x8xf32, #tpu.memory_space<vmem>>, vector<8x4xf32>
    %c0_3 = arith.constant 0 : index
    %c4 = arith.constant 4 : index
    %3 = vector.load %arg5[%c0_3, %c4] : memref<8x8xf32, #tpu.memory_space<vmem>>, vector<8x4xf32>
    %4 = arith.mulf %2, %3 : vector<8x4xf32>
    %cst = arith.constant dense<0.000000e+00> : vector<8xf32>
    %5 = vector.multi_reduction <add>, %4, %cst [1] : vector<8x4xf32> to vector<8xf32>
    %6 = vector.shape_cast %5 : vector<8xf32> to vector<8x1xf32>
    %c0_4 = arith.constant 0 : index
    %c0_5 = arith.constant 0 : index
    %7 = vector.load %arg6[%c0_4, %c0_5] : memref<8x1xf32, #tpu.memory_space<vmem>>, vector<8x1xf32>
    tpu.vector_store %arg6[%c0_4, %c0_5], %6 {strides = array<i32>} : memref<8x1xf32, #tpu.memory_space<vmem>>, vector<8x1xf32>,
    return
  }
  func.func @transform_0(%arg0: i32, %arg1: memref<8xi32, #tpu.memory_space<smem>>, %arg2: memref<8xi32, #tpu.memory_space<smem>>) -> (i32, i32) {
    %c0_i32 = arith.constant 0 : i32
    %c0_i32_0 = arith.constant 0 : i32
    %c0_i32_1 = arith.constant 0 : i32
    return %c0_i32, %c0_i32_0 : i32, i32
  }
  func.func @transform_1(%arg0: i32, %arg1: memref<8xi32, #tpu.memory_space<smem>>, %arg2: memref<8xi32, #tpu.memory_space<smem>>) -> (i32, i32) {
    %c0_i32 = arith.constant 0 : i32
    %c0_i32_0 = arith.constant 0 : i32
    %c0_i32_1 = arith.constant 0 : i32
    return %c0_i32, %c0_i32_0 : i32, i32
  }
  func.func @transform_2(%arg0: i32, %arg1: memref<8xi32, #tpu.memory_space<smem>>, %arg2: memref<8xi32, #tpu.memory_space<smem>>) -> (i32, i32) {
    %c0_i32 = arith.constant 0 : i32
    %c0_i32_0 = arith.constant 0 : i32
    return %arg0, %c0_i32 : i32, i32
  }
  func.func @transform_3(%arg0: i32, %arg1: memref<8xi32, #tpu.memory_space<smem>>, %arg2: memref<8xi32, #tpu.memory_space<smem>>) -> (i32, i32) {
    %c0_i32 = arith.constant 0 : i32
    %c0_i32_0 = arith.constant 0 : i32
    return %arg0, %c0_i32 : i32, i32
  }
}

</mosaic_0001>

<llo_original>
// kernel: tpu_custom_call.1
$region0: #{tpu_custom_call.1}
  #allocation0 [shape = 'u32[]', space=smem, size = 0x4, offset = 0x4, fixed_abs, tag = 'smem constant byte address 0x4 - core index']
  #allocation1 [shape = 'u32[144,128]{1,0:T(1,128)}', space=vmem, size = 0x12000, scoped, tag = 'internal scratch']
  #allocation2 [shape = 's32[1]{0}', space=sflag, size = 0x4, scoped, tag = 'scoped memory for tpu_custom_call.1']
  #allocation3 [shape = 'u8[512]{0}', space=smem, size = 0x200, scoped, tag = 'prefetched SMEM operand 0']
  #allocation4 [shape = 'u8[512]{0}', space=smem, size = 0x200, scoped, tag = 'prefetched SMEM operand 1']
  %s0 = inlined_call_operand.vmem [shape: s32[8], index: 0, kind: input, shape index: {}]
  %s1 = inlined_call_operand.vmem [shape: s32[8], index: 1, kind: input, shape index: {}]
  %s2 = inlined_call_operand.vmem [shape: f32[16,4], index: 2, kind: input, shape index: {}]
  %s3 = inlined_call_operand.vmem [shape: f32[32,4], index: 3, kind: input, shape index: {}]
  %s4 = inlined_call_operand.hbm [shape: f32[8,8], index: 4, kind: output, shape index: {0}]
  %s5 = inlined_call_operand.vmem [shape: f32[8,1], index: 5, kind: output, shape index: {1}]
  %6 = xla_tuple %s4, %s5
  %s7 = sld [smem:[#allocation0]]
  $region33: #{tpu_custom_call.1} parent=0
    _
  %s9 = ssub.s32 1, %s7
  %s10 = scalar_select 0, %s9, %s7
  %s11 = sshll.u32 %s0, 4
  %s12 = int_to_ptr.vmem [resolvable:$true] %s11
  %14 = dma.vmem_to_smem %s12, 16, [#allocation3], [#allocation2]
  %s15 = sshll.u32 %s1, 4
  %s16 = int_to_ptr.vmem [resolvable:$true] %s15
  %18 = dma.vmem_to_smem %s16, 16, [#allocation4], [#allocation2]
  %19 = dma.done [#allocation2], 32
  %20 = sfence
  $region1: #{tpu_custom_call.1} parent=0
    #allocation5 [shape = 'u8[4096]{0}', space=vmem, size = 0x1000, scoped, tag = 'output window, operand 0, single buffered']
    #allocation6 [shape = 's32[1]{0}', space=sflag, size = 0x4, scoped, tag = 'scoped memory for tpu_custom_call.1']
    %21 = vsyncpa [#allocation6], 0
    // Predicated region
    $region2: #{tpu_custom_call.1} parent=1 // pred_check
      _
    $region3: #{tpu_custom_call.1} parent=1 // pred_check_branch
      %23 = sbr.rel (0) target = $region5
    $region4: #{tpu_custom_call.1} parent=1 // pred_region
      _
    $region5: #{tpu_custom_call.1} parent=1 // pred_fallthru
      _
    // Predicated region
    $region6: #{tpu_custom_call.1} parent=1 // pred_check
      _
    $region7: #{tpu_custom_call.1} parent=1 // pred_check_branch
      %25 = sbr.rel (0) target = $region9
    $region8: #{tpu_custom_call.1} parent=1 // pred_region
      _
    $region9: #{tpu_custom_call.1} parent=1 // pred_fallthru
      _
    %s26 = smul.u32 0, 8
    loop: start=0, step=1, limit=8
    $region10: #{tpu_custom_call.1} parent=1 // loop_pre_header
      _
    $region11: #{tpu_custom_call.1} parent=1 // loop_header
      %s28 = sphi 0, %s32
      %p29 = scmp.ge.s32.totalorder %s28, 8
    $region12: #{tpu_custom_call.1} parent=1 // loop_header_branch
      %31 = sbr.rel (%p29) target = $region16
    $region13: #{tpu_custom_call.1} parent=1 // loop_body
      %s33 = sadd.s32 %s26, %s28
      %s34 = sld [smem:[#allocation3 + %s33]]
      %s35 = sld [smem:[#allocation4 + %s33]]
      %s36 = scalar_lea.vmem %s2, %s34
      %v37 = vld [vmem:[%s36] sm:$0x1]
      %s38 = scalar_lea.vmem [#allocation5], %s28
      %vm39 = vcmask 24576
      %40 = vst.msk [vmem:[%s38] sm:$0x1] %vm39, %v37
      %s41 = scalar_lea.vmem %s3, %s35
      %v42 = vld [vmem:[%s41] sm:$0x1]
      %44 = vrot.lane.b32.xlu0 %v42, 4
      %v45 = vpop.permute.xlu0 %44
      %vm47 = vcmask 57376
      %48 = vst.msk [vmem:[%s38] sm:$0x1] %vm47, %v45
    $region14: #{tpu_custom_call.1} parent=1 // loop_footer
      %s32 = sadd.s32 1, %s28
    $region15: #{tpu_custom_call.1} parent=1 // loop_footer_branch
      %27 = sbr.rel target = $region11
    $region16: #{tpu_custom_call.1} parent=1 // loop_exit
      _
    %v49 = vld [vmem:[#allocation5] sm:$0xff]
    %51 = vrot.lane.b32.xlu0 %v49, 124
    %v52 = vpop.permute.xlu0 %51
    %v54 = vmul.f32 %v49, %v52
    %vm55 = vcmask 31744
    %v56 = vsel %vm55, %v54, 0.0
    %57 = vadd.xlane.f32.xlu0 %v56
    %v58 = vpop.xlane.xlu0 %57
    %vm59 = vcmask 7168
    %60 = vst.msk [vmem:[%s5] sm:$0xff] %vm59, %v58
    // Predicated region
    $region17: #{tpu_custom_call.1} parent=1 // pred_check
      _
    $region18: #{tpu_custom_call.1} parent=1 // pred_check_branch
      %62 = sbr.rel (0) target = $region20
    $region19: #{tpu_custom_call.1} parent=1 // pred_region
      %s64 = ssub.s32 128, 128
      %65 = vsyncadd [#allocation6], %s64
      %s67 = sshll.u32 [#allocation5], 4
      %s68 = int_to_ptr.vmem [resolvable:$true] %s67
      %70 = dma.vmem_to_hbm [thread:$0]  %s68, 128, %s4, [#allocation6]
    $region20: #{tpu_custom_call.1} parent=1 // pred_fallthru
      _
    // Predicated region
    $region21: #{tpu_custom_call.1} parent=1 // pred_check
      _
    $region22: #{tpu_custom_call.1} parent=1 // pred_check_branch
      %72 = sbr.rel (0) target = $region24
    $region23: #{tpu_custom_call.1} parent=1 // pred_region
      _
    $region24: #{tpu_custom_call.1} parent=1 // pred_fallthru
      _
    // Predicated region
    $region25: #{tpu_custom_call.1} parent=1 // pred_check
      _
    $region26: #{tpu_custom_call.1} parent=1 // pred_check_branch
      %74 = sbr.rel (0) target = $region28
    $region27: #{tpu_custom_call.1} parent=1 // pred_region
      %75 = dma.done [#allocation6], 128
    $region28: #{tpu_custom_call.1} parent=1 // pred_fallthru
      _
    // Predicated region
    $region29: #{tpu_custom_call.1} parent=1 // pred_check
      _
    $region30: #{tpu_custom_call.1} parent=1 // pred_check_branch
      %77 = sbr.rel (0) target = $region32
    $region31: #{tpu_custom_call.1} parent=1 // pred_region
      _
    $region32: #{tpu_custom_call.1} parent=1 // pred_fallthru
      _
    %78 = vsyncpa [#allocation6], 1

</llo_original>
